<compile_context>
chip_gen: v7x
topology: tpu7x:2x2x1
jax: 0.10.0
libtpu: 0.0.40
codegen_flags: <defaults>
</compile_context>

<pallas_src>
import functools

import jax
import jax.numpy as jnp
from jax.experimental import pallas as pl
from jax.experimental.pallas import tpu as pltpu

_LANES = 128


def _round_up(n, m):
    return ((n + m - 1) // m) * m


def _pack_params(params):
    """Pack all weights/biases into one (rows, 128) f32 slab + static layout."""
    (ew1, eb1, ew2, eb2, ewm, ebm, ewl, ebl,
     dw1, db1, dw2, db2, dw3, db3) = params
    # Fuse the mean/logvar heads into a single matmul: (32, 2L) / (1, 2L).
    ewml = jnp.concatenate([ewm, ewl], axis=1)
    ebml = jnp.concatenate([ebm, ebl], axis=1)
    entries = [
        ("ew1", ew1), ("eb1", eb1), ("ew2", ew2), ("eb2", eb2),
        ("ewml", ewml), ("ebml", ebml),
        ("dw1", dw1), ("db1", db1), ("dw2", dw2), ("db2", db2),
        ("dw3", dw3), ("db3", db3),
    ]
    layout = {}
    blocks = []
    off = 0
    for name, a in entries:
        r, c = a.shape
        assert c <= _LANES, f"{name} has {c} output features > {_LANES}"
        rp = _round_up(r, 8)  # keep every block's row offset 8-aligned
        blk = jnp.zeros((rp, _LANES), jnp.float32).at[:r, :c].set(
            a.astype(jnp.float32))
        layout[name] = (off, r, c)
        blocks.append(blk)
        off += rp
    slab = jnp.concatenate(blocks, axis=0)
    return slab, layout


def _vae_kernel(x_ref, eps_ref, p_ref, out_ref, *, layout, D, L):
    def w(name):
        off, r, c = layout[name]
        return p_ref[off:off + r, 0:c]   # static slice of the resident slab

    x = x_ref[...]

    # ---- Encoder ----
    h = jnp.dot(x, w("ew1"), preferred_element_type=jnp.float32) + w("eb1")
    h = jnp.maximum(h, 0.0)                                     # relu(fc1)
    h = jnp.dot(h, w("ew2"), preferred_element_type=jnp.float32) + w("eb2")
    h = jnp.maximum(h, 0.0)                                     # relu(fc2)
    # Fused mean/logvar head: one MXU pass, split the lanes afterwards.
    zml = jnp.dot(h, w("ewml"), preferred_element_type=jnp.float32) + w("ebml")
    z_mean = zml[:, 0:L]
    z_logvar = zml[:, L:2 * L]

    # ---- Reparameterize: z = mean + eps * exp(0.5 * logvar) ----
    z = z_mean + eps_ref[...] * jnp.exp(0.5 * z_logvar)

    # ---- Decoder ----
    # fc1 has contraction depth L (=2): do it on the VPU as an outer-product
    # sum instead of spending another serial MXU pass.
    dw1 = w("dw1")                       # (L, 32)
    d = w("db1")                         # (1, 32) -> broadcasts to (B, 32)
    for l in range(L):
        d = d + z[:, l:l + 1] * dw1[l:l + 1, :]
    d = jnp.maximum(d, 0.0)                                     # relu(fc1)
    d = jnp.dot(d, w("dw2"), preferred_element_type=jnp.float32) + w("db2")
    d = jnp.maximum(d, 0.0)                                     # relu(fc2)
    recon = jnp.dot(d, w("dw3"), preferred_element_type=jnp.float32) + w("db3")

    # ---- One lane-dense output block: [recon | z_mean | z_logvar | pad] ----
    # (padding lanes beyond D + 2L are never read by the wrapper)
    out_ref[:, 0:D] = recon
    out_ref[:, D:D + L] = z_mean
    out_ref[:, D + L:D + 2 * L] = z_logvar


def _linear_params(key, fan_in, fan_out):
    """PyTorch nn.Linear default init: U(-1/sqrt(fan_in), 1/sqrt(fan_in))."""
    kw, kb = jax.random.split(key)
    bound = 1.0 / (fan_in ** 0.5)
    # stored as (in, out) so the kernel does x @ W + b
    w = jax.random.uniform(kw, (fan_in, fan_out), jnp.float32, -bound, bound)
    b = jax.random.uniform(kb, (1, fan_out), jnp.float32, -bound, bound)
    return w, b


def init_vae_params(key, input_dim, latent_dim):
    keys = jax.random.split(key, 7)
    # Encoder: input_dim -> 64 -> 32 -> (latent_dim, latent_dim)
    ew1, eb1 = _linear_params(keys[0], input_dim, 64)
    ew2, eb2 = _linear_params(keys[1], 64, 32)
    ewm, ebm = _linear_params(keys[2], 32, latent_dim)
    ewl, ebl = _linear_params(keys[3], 32, latent_dim)
    # Decoder: latent_dim -> 32 -> 64 -> input_dim
    dw1, db1 = _linear_params(keys[4], latent_dim, 32)
    dw2, db2 = _linear_params(keys[5], 32, 64)
    dw3, db3 = _linear_params(keys[6], 64, input_dim)
    return (ew1, eb1, ew2, eb2, ewm, ebm, ewl, ebl,
            dw1, db1, dw2, db2, dw3, db3)


def vae_forward(x, eps, params):
    """Returns (reconstruction, z_mean, z_logvar), matching VAE.forward."""
    B, D = x.shape
    L = eps.shape[1]
    assert D + 2 * L <= _LANES, "packed output must fit in 128 lanes"

    slab, layout = _pack_params(params)

    # Batch tiling: single block for small B, 256-row tiles for large B.
    bt = B if B <= 256 else 256
    grid = (pl.cdiv(B, bt),)

    kernel = functools.partial(_vae_kernel, layout=layout, D=D, L=L)

    out = pl.pallas_call(
        kernel,
        out_shape=jax.ShapeDtypeStruct((B, _LANES), jnp.float32),
        grid=grid,
        in_specs=[
            pl.BlockSpec((bt, D), lambda i: (i, 0)),       # x tile
            pl.BlockSpec((bt, L), lambda i: (i, 0)),       # eps tile
            pl.BlockSpec(slab.shape, lambda i: (0, 0)),    # resident params
        ],
        out_specs=pl.BlockSpec((bt, _LANES), lambda i: (i, 0)),
        compiler_params=pltpu.CompilerParams(
            dimension_semantics=("parallel",)),
    )(x, eps, slab)

    recon = out[:, 0:D]
    z_mean = out[:, D:D + L]
    z_logvar = out[:, D + L:D + 2 * L]
    return recon, z_mean, z_logvar


if __name__ == "__main__":
    batch = 8
    input_dim = 16
    latent_dim = 2

    key = jax.random.PRNGKey(0)
    k_x, k_eps, k_params = jax.random.split(key, 3)

    x = jax.random.normal(k_x, (batch, input_dim), jnp.float32)
    # TODO(synk): torch.randn_like noise is generated host-side and passed in as eps.
    eps = jax.random.normal(k_eps, (batch, latent_dim), jnp.float32)
    params = init_vae_params(k_params, input_dim, latent_dim)

    recon, z_mean, z_logvar = vae_forward(x, eps, params)
    jax.block_until_ready((recon, z_mean, z_logvar))

    # Pure-JAX reference check of the same forward pass.
    (ew1, eb1, ew2, eb2, ewm, ebm, ewl, ebl,
     dw1, db1, dw2, db2, dw3, db3) = params
    h = jnp.maximum(x @ ew1 + eb1, 0.0)
    h = jnp.maximum(h @ ew2 + eb2, 0.0)
    zm = h @ ewm + ebm
    zl = h @ ewl + ebl
    z = zm + eps * jnp.exp(0.5 * zl)
    d = jnp.maximum(z @ dw1 + db1, 0.0)
    d = jnp.maximum(d @ dw2 + db2, 0.0)
    recon_ref = d @ dw3 + db3

    assert jnp.allclose(recon, recon_ref, atol=1e-5), "reconstruction mismatch"
    assert jnp.allclose(z_mean, zm, atol=1e-5), "z_mean mismatch"
    assert jnp.allclose(z_logvar, zl, atol=1e-5), "z_logvar mismatch"

    print("KERNEL_OK")
</pallas_src>

<mosaic_0001>
module attributes {stable_mosaic.version = 11 : i64} {
  func.func @_vae_kernel(%arg0: i32, %arg1: memref<8x16xf32, #tpu.memory_space<vmem>>, %arg2: memref<8x2xf32, #tpu.memory_space<vmem>>, %arg3: memref<264x128xf32, #tpu.memory_space<vmem>>, %arg4: memref<8x128xf32, #tpu.memory_space<vmem>>) attributes {dimension_semantics = [#tpu.dimension_semantics<parallel>], iteration_bounds = array<i64: 1>, scalar_prefetch = 0 : i64, scratch_operands = 0 : i64, tpu.core_type = #tpu.core_type<tc>, window_params = [{transform_indices = @transform_0, window_bounds = array<i64: 8, 16>}, {transform_indices = @transform_1, window_bounds = array<i64: 8, 2>}, {pipeline_mode = #tpu.pipeline_mode<synchronous>, transform_indices = @transform_2, window_bounds = array<i64: 264, 128>}, {transform_indices = @transform_3, window_bounds = array<i64: 8, 128>}]} {
    %c0 = arith.constant 0 : index
    %c0_0 = arith.constant 0 : index
    %0 = vector.load %arg1[%c0, %c0_0] : memref<8x16xf32, #tpu.memory_space<vmem>>, vector<8x16xf32>
    %c0_1 = arith.constant 0 : index
    %c0_2 = arith.constant 0 : index
    %1 = vector.load %arg3[%c0_1, %c0_2] : memref<264x128xf32, #tpu.memory_space<vmem>>, vector<16x64xf32>
    %cst = arith.constant dense<0.000000e+00> : vector<8x64xf32>
    %2 = tpu.matmul %0, %1, %cst {dimension_numbers = #tpu.dot_dimension_numbers<[1], [0], [0], [1], [0, 0, 1, 1], [], []>} : vector<8x16xf32>, vector<16x64xf32>, vector<8x64xf32> -> vector<8x64xf32>
    %c16 = arith.constant 16 : index
    %c0_3 = arith.constant 0 : index
    %3 = vector.load %arg3[%c16, %c0_3] : memref<264x128xf32, #tpu.memory_space<vmem>>, vector<1x64xf32>
    %4 = vector.broadcast %3 : vector<1x64xf32> to vector<8x64xf32>
    %5 = arith.addf %2, %4 : vector<8x64xf32>
    %cst_4 = arith.constant 0.000000e+00 : f32
    %6 = vector.broadcast %cst_4 : f32 to vector<8x64xf32>
    %7 = arith.maximumf %5, %6 : vector<8x64xf32>
    %c24 = arith.constant 24 : index
    %c0_5 = arith.constant 0 : index
    %8 = vector.load %arg3[%c24, %c0_5] : memref<264x128xf32, #tpu.memory_space<vmem>>, vector<64x32xf32>
    %cst_6 = arith.constant dense<0.000000e+00> : vector<8x32xf32>
    %9 = tpu.matmul %7, %8, %cst_6 {dimension_numbers = #tpu.dot_dimension_numbers<[1], [0], [0], [1], [0, 0, 1, 1], [], []>} : vector<8x64xf32>, vector<64x32xf32>, vector<8x32xf32> -> vector<8x32xf32>
    %c88 = arith.constant 88 : index
    %c0_7 = arith.constant 0 : index
    %10 = vector.load %arg3[%c88, %c0_7] : memref<264x128xf32, #tpu.memory_space<vmem>>, vector<1x32xf32>
    %11 = vector.broadcast %10 : vector<1x32xf32> to vector<8x32xf32>
    %12 = arith.addf %9, %11 : vector<8x32xf32>
    %cst_8 = arith.constant 0.000000e+00 : f32
    %13 = vector.broadcast %cst_8 : f32 to vector<8x32xf32>
    %14 = arith.maximumf %12, %13 : vector<8x32xf32>
    %c96 = arith.constant 96 : index
    %c0_9 = arith.constant 0 : index
    %15 = vector.load %arg3[%c96, %c0_9] : memref<264x128xf32, #tpu.memory_space<vmem>>, vector<32x4xf32>
    %cst_10 = arith.constant dense<0.000000e+00> : vector<8x4xf32>
    %16 = tpu.matmul %14, %15, %cst_10 {dimension_numbers = #tpu.dot_dimension_numbers<[1], [0], [0], [1], [0, 0, 1, 1], [], []>} : vector<8x32xf32>, vector<32x4xf32>, vector<8x4xf32> -> vector<8x4xf32>
    %c128 = arith.constant 128 : index
    %c0_11 = arith.constant 0 : index
    %17 = vector.load %arg3[%c128, %c0_11] : memref<264x128xf32, #tpu.memory_space<vmem>>, vector<1x4xf32>
    %18 = vector.broadcast %17 : vector<1x4xf32> to vector<8x4xf32>
    %19 = arith.addf %16, %18 : vector<8x4xf32>
    %20 = vector.extract_strided_slice %19 {offsets = [0, 0], sizes = [8, 2], strides = [1, 1]} : vector<8x4xf32> to vector<8x2xf32>
    %21 = vector.extract_strided_slice %19 {offsets = [0, 2], sizes = [8, 2], strides = [1, 1]} : vector<8x4xf32> to vector<8x2xf32>
    %c0_12 = arith.constant 0 : index
    %c0_13 = arith.constant 0 : index
    %22 = vector.load %arg2[%c0_12, %c0_13] : memref<8x2xf32, #tpu.memory_space<vmem>>, vector<8x2xf32>
    %cst_14 = arith.constant 5.000000e-01 : f32
    %23 = vector.broadcast %cst_14 : f32 to vector<8x2xf32>
    %24 = arith.mulf %23, %21 : vector<8x2xf32>
    %25 = math.exp %24 : vector<8x2xf32>
    %26 = arith.mulf %22, %25 : vector<8x2xf32>
    %27 = arith.addf %20, %26 : vector<8x2xf32>
    %c136 = arith.constant 136 : index
    %c0_15 = arith.constant 0 : index
    %28 = vector.load %arg3[%c136, %c0_15] : memref<264x128xf32, #tpu.memory_space<vmem>>, vector<2x32xf32>
    %c144 = arith.constant 144 : index
    %c0_16 = arith.constant 0 : index
    %29 = vector.load %arg3[%c144, %c0_16] : memref<264x128xf32, #tpu.memory_space<vmem>>, vector<1x32xf32>
    %30 = vector.extract_strided_slice %27 {offsets = [0, 0], sizes = [8, 1], strides = [1, 1]} : vector<8x2xf32> to vector<8x1xf32>
    %31 = vector.extract_strided_slice %28 {offsets = [0, 0], sizes = [1, 32], strides = [1, 1]} : vector<2x32xf32> to vector<1x32xf32>
    %32 = vector.broadcast %30 : vector<8x1xf32> to vector<8x32xf32>
    %33 = vector.broadcast %31 : vector<1x32xf32> to vector<8x32xf32>
    %34 = arith.mulf %32, %33 : vector<8x32xf32>
    %35 = vector.broadcast %29 : vector<1x32xf32> to vector<8x32xf32>
    %36 = arith.addf %35, %34 : vector<8x32xf32>
    %37 = vector.extract_strided_slice %27 {offsets = [0, 1], sizes = [8, 1], strides = [1, 1]} : vector<8x2xf32> to vector<8x1xf32>
    %38 = vector.extract_strided_slice %28 {offsets = [1, 0], sizes = [1, 32], strides = [1, 1]} : vector<2x32xf32> to vector<1x32xf32>
    %39 = vector.broadcast %37 : vector<8x1xf32> to vector<8x32xf32>
    %40 = vector.broadcast %38 : vector<1x32xf32> to vector<8x32xf32>
    %41 = arith.mulf %39, %40 : vector<8x32xf32>
    %42 = arith.addf %36, %41 : vector<8x32xf32>
    %cst_17 = arith.constant 0.000000e+00 : f32
    %43 = vector.broadcast %cst_17 : f32 to vector<8x32xf32>
    %44 = arith.maximumf %42, %43 : vector<8x32xf32>
    %c152 = arith.constant 152 : index
    %c0_18 = arith.constant 0 : index
    %45 = vector.load %arg3[%c152, %c0_18] : memref<264x128xf32, #tpu.memory_space<vmem>>, vector<32x64xf32>
    %cst_19 = arith.constant dense<0.000000e+00> : vector<8x64xf32>
    %46 = tpu.matmul %44, %45, %cst_19 {dimension_numbers = #tpu.dot_dimension_numbers<[1], [0], [0], [1], [0, 0, 1, 1], [], []>} : vector<8x32xf32>, vector<32x64xf32>, vector<8x64xf32> -> vector<8x64xf32>
    %c184 = arith.constant 184 : index
    %c0_20 = arith.constant 0 : index
    %47 = vector.load %arg3[%c184, %c0_20] : memref<264x128xf32, #tpu.memory_space<vmem>>, vector<1x64xf32>
    %48 = vector.broadcast %47 : vector<1x64xf32> to vector<8x64xf32>
    %49 = arith.addf %46, %48 : vector<8x64xf32>
    %cst_21 = arith.constant 0.000000e+00 : f32
    %50 = vector.broadcast %cst_21 : f32 to vector<8x64xf32>
    %51 = arith.maximumf %49, %50 : vector<8x64xf32>
    %c192 = arith.constant 192 : index
    %c0_22 = arith.constant 0 : index
    %52 = vector.load %arg3[%c192, %c0_22] : memref<264x128xf32, #tpu.memory_space<vmem>>, vector<64x16xf32>
    %cst_23 = arith.constant dense<0.000000e+00> : vector<8x16xf32>
    %53 = tpu.matmul %51, %52, %cst_23 {dimension_numbers = #tpu.dot_dimension_numbers<[1], [0], [0], [1], [0, 0, 1, 1], [], []>} : vector<8x64xf32>, vector<64x16xf32>, vector<8x16xf32> -> vector<8x16xf32>
    %c256 = arith.constant 256 : index
    %c0_24 = arith.constant 0 : index
    %54 = vector.load %arg3[%c256, %c0_24] : memref<264x128xf32, #tpu.memory_space<vmem>>, vector<1x16xf32>
    %55 = vector.broadcast %54 : vector<1x16xf32> to vector<8x16xf32>
    %56 = arith.addf %53, %55 : vector<8x16xf32>
    %c0_25 = arith.constant 0 : index
    %c0_26 = arith.constant 0 : index
    %57 = vector.load %arg4[%c0_25, %c0_26] : memref<8x128xf32, #tpu.memory_space<vmem>>, vector<8x16xf32>
    tpu.vector_store %arg4[%c0_25, %c0_26], %56 {strides = array<i32>} : memref<8x128xf32, #tpu.memory_space<vmem>>, vector<8x16xf32>,
    %c0_27 = arith.constant 0 : index
    %c16_28 = arith.constant 16 : index
    %58 = vector.load %arg4[%c0_27, %c16_28] : memref<8x128xf32, #tpu.memory_space<vmem>>, vector<8x2xf32>
    tpu.vector_store %arg4[%c0_27, %c16_28], %20 {strides = array<i32>} : memref<8x128xf32, #tpu.memory_space<vmem>>, vector<8x2xf32>,
    %c0_29 = arith.constant 0 : index
    %c18 = arith.constant 18 : index
    %59 = vector.load %arg4[%c0_29, %c18] : memref<8x128xf32, #tpu.memory_space<vmem>>, vector<8x2xf32>
    tpu.vector_store %arg4[%c0_29, %c18], %21 {strides = array<i32>} : memref<8x128xf32, #tpu.memory_space<vmem>>, vector<8x2xf32>,
    return
  }
  func.func @transform_0(%arg0: i32) -> (i32, i32) {
    %c0_i32 = arith.constant 0 : i32
    %c0_i32_0 = arith.constant 0 : i32
    return %arg0, %c0_i32 : i32, i32
  }
  func.func @transform_1(%arg0: i32) -> (i32, i32) {
    %c0_i32 = arith.constant 0 : i32
    %c0_i32_0 = arith.constant 0 : i32
    return %arg0, %c0_i32 : i32, i32
  }
  func.func @transform_2(%arg0: i32) -> (i32, i32) {
    %c0_i32 = arith.constant 0 : i32
    %c0_i32_0 = arith.constant 0 : i32
    %c0_i32_1 = arith.constant 0 : i32
    return %c0_i32, %c0_i32_0 : i32, i32
  }
  func.func @transform_3(%arg0: i32) -> (i32, i32) {
    %c0_i32 = arith.constant 0 : i32
    %c0_i32_0 = arith.constant 0 : i32
    return %arg0, %c0_i32 : i32, i32
  }
}

</mosaic_0001>

<llo_original>
// kernel: tpu_custom_call.1
$region0: #{tpu_custom_call.1}
  #allocation0 [shape = 'u32[]', space=smem, size = 0x4, offset = 0x4, fixed_abs, tag = 'smem constant byte address 0x4 - core index']
  #allocation1 [shape = 'u32[144,128]{1,0:T(1,128)}', space=vmem, size = 0x12000, scoped, tag = 'internal scratch']
  %s0 = inlined_call_operand.vmem [shape: f32[8,16], index: 0, kind: input, shape index: {}]
  %s1 = inlined_call_operand.vmem [shape: f32[8,2], index: 1, kind: input, shape index: {}]
  %s2 = inlined_call_operand.hbm [shape: f32[264,128], index: 2, kind: input, shape index: {}]
  %s3 = inlined_call_operand.hbm [shape: f32[8,128], index: 3, kind: output, shape index: {}]
  %s4 = sld [smem:[#allocation0]]
  $region26: #{tpu_custom_call.1} parent=0
    _
  %s6 = ssub.s32 1, %s4
  %s7 = scalar_select 0, %s6, %s4
  $region1: #{tpu_custom_call.1} parent=0
    #allocation2 [shape = 'u8[135168]{0}', space=vmem, size = 0x21000, scoped, tag = 'input window, operand 2, single buffered']
    #allocation3 [shape = 's32[1]{0}', space=sflag, size = 0x4, scoped, tag = 'scoped memory for tpu_custom_call.1']
    #allocation4 [shape = 's32[1]{0}', space=sflag, size = 0x4, scoped, tag = 'scoped memory for tpu_custom_call.1']
    #allocation5 [shape = 'u8[4096]{0}', space=vmem, size = 0x1000, scoped, tag = 'output window, operand 0, single buffered']
    %8 = vsyncpa [#allocation3], 0
    %9 = vsyncpa [#allocation4], 0
    // Predicated region
    $region2: #{tpu_custom_call.1} parent=1 // pred_check
      _
    $region3: #{tpu_custom_call.1} parent=1 // pred_check_branch
      %11 = sbr.rel (0) target = $region5
    $region4: #{tpu_custom_call.1} parent=1 // pred_region
      _
    $region5: #{tpu_custom_call.1} parent=1 // pred_fallthru
      _
    // Predicated region
    $region6: #{tpu_custom_call.1} parent=1 // pred_check
      _
    $region7: #{tpu_custom_call.1} parent=1 // pred_check_branch
      %13 = sbr.rel (0) target = $region9
    $region8: #{tpu_custom_call.1} parent=1 // pred_region
      _
    $region9: #{tpu_custom_call.1} parent=1 // pred_fallthru
      _
    // Predicated region
    $region10: #{tpu_custom_call.1} parent=1 // pred_check
      _
    $region11: #{tpu_custom_call.1} parent=1 // pred_check_branch
      %15 = sbr.rel (0) target = $region13
    $region12: #{tpu_custom_call.1} parent=1 // pred_region
      %s17 = ssub.s32 4224, 4224
      %18 = vsyncadd [#allocation3], %s17
      %s19 = sshll.u32 [#allocation2], 4
      %s20 = int_to_ptr.vmem [resolvable:$true] %s19
      %25 = dma.hbm_to_vmem [thread:$0]  %s2, 4224, %s20, [#allocation3], 128, 128, 8
    $region13: #{tpu_custom_call.1} parent=1 // pred_fallthru
      _
    // Predicated region
    $region14: #{tpu_custom_call.1} parent=1 // pred_check
      _
    $region15: #{tpu_custom_call.1} parent=1 // pred_check_branch
      %27 = sbr.rel (0) target = $region17
    $region16: #{tpu_custom_call.1} parent=1 // pred_region
      %28 = dma.done [#allocation3], 4224
    $region17: #{tpu_custom_call.1} parent=1 // pred_fallthru
      _
    %v29 = vld [vmem:[%s0] sm:$0xff]
    %v30 = vld [vmem:[#allocation2] sm:$0xff]
    %v31 = vld [vmem:[#allocation2 + $0x8] sm:$0xff]
    %v32 = vld [vmem:[#allocation2 + $0x10] sm:$0x1]
    %v33 = vlaneseq
    %v34 = vshrl.u32 %v33, 7
    %v35 = vsub.s32 0, %v34
    %v36 = vrot.slane %v32, %v35
    %vm37 = vcmask 130048
    %v39 = vsel %vm37, %v29, 0
    %41 = vmatprep.subr.mxu0 0.0
    %42 = vmatpush1.msra.mxu0 %v30
    %43 = vmatprep.subr.mxu0 0.0
    %44 = vmatpush1.msra.mxu0 %v31
    %45 = vmatprep.subr.mxu0 0.0
    %46 = vmatpush1.msra.mxu0 0.0
    %47 = vmatprep.subr.mxu0 0.0
    %48 = vmatpush1.msra.mxu0 0.0
    %49 = vmatprep.subr.mxu0 0.0
    %50 = vmatpush1.msra.mxu0 0.0
    %51 = vmatprep.subr.mxu0 0.0
    %52 = vmatpush1.msra.mxu0 0.0
    %53 = vmatprep.subr.mxu0 0.0
    %54 = vmatpush1.msra.mxu0 0.0
    %55 = vmatprep.subr.mxu0 0.0
    %56 = vmatpush1.msra.mxu0 0.0
    %57 = vmatprep.subr.mxu0 0.0
    %58 = vmatpush1.msra.mxu0 0.0
    %59 = vmatprep.subr.mxu0 0.0
    %60 = vmatpush1.msra.mxu0 0.0
    %61 = vmatprep.subr.mxu0 0.0
    %62 = vmatpush1.msra.mxu0 0.0
    %63 = vmatprep.subr.mxu0 0.0
    %64 = vmatpush1.msra.mxu0 0.0
    %65 = vmatprep.subr.mxu0 0.0
    %66 = vmatpush1.msra.mxu0 0.0
    %67 = vmatprep.subr.mxu0 0.0
    %68 = vmatpush1.msra.mxu0 0.0
    %69 = vmatprep.subr.mxu0 0.0
    %70 = vmatpush1.msra.mxu0 0.0
    %71 = vmatprep.subr.mxu0 0.0
    %72 = vmatpush1.msra.mxu0 0.0
    %73 = vmatprep.subr.mxu0 0.0
    %74 = vmatpush1.msra.mxu0 0.0
    %75 = vmatprep.subr.mxu0 0.0
    %76 = vmatpush1.msra.mxu0 0.0
    %77 = vmatprep.subr.mxu0 0.0
    %78 = vmatpush1.msra.mxu0 0.0
    %79 = vmatprep.subr.mxu0 0.0
    %80 = vmatpush1.msra.mxu0 0.0
    %81 = vmatprep.subr.mxu0 0.0
    %82 = vmatpush1.msra.mxu0 0.0
    %83 = vmatprep.subr.mxu0 0.0
    %84 = vmatpush1.msra.mxu0 0.0
    %85 = vmatprep.subr.mxu0 0.0
    %86 = vmatpush1.msra.mxu0 0.0
    %87 = vmatprep.subr.mxu0 0.0
    %88 = vmatpush1.msra.mxu0 0.0
    %89 = vmatprep.subr.mxu0 0.0
    %90 = vmatpush1.msra.mxu0 0.0
    %91 = vmatprep.subr.mxu0 0.0
    %92 = vmatpush1.msra.mxu0 0.0
    %93 = vmatprep.subr.mxu0 0.0
    %94 = vmatpush1.msra.mxu0 0.0
    %95 = vmatprep.subr.mxu0 0.0
    %96 = vmatpush1.msra.mxu0 0.0
    %97 = vmatprep.subr.mxu0 0.0
    %98 = vmatpush1.msra.mxu0 0.0
    %99 = vmatprep.subr.mxu0 0.0
    %100 = vmatpush1.msra.mxu0 0.0
    %101 = vmatprep.subr.mxu0 0.0
    %102 = vmatpush1.msra.mxu0 0.0
    %103 = vmatprep.subr.mxu0 0.0
    %104 = vmatpush1.msra.mxu0 0.0
    %105 = vmatprep.mubr.f32.mxu0 0.0
    %106 = vmatmul.mubr.f32.gmra.mrb[0].mxu0 %v39
    %v107 = vpop.f32.mrb[0].mxu0
    %v108 = vadd.f32 %v36, %v107
    %v109 = vpop.f32.mrb[0].mxu0
    %110 = vdwg.mxu0
    %v111 = vmax.f32 %v108, 0.0
    %v112 = vld [vmem:[#allocation2 + $0x18] sm:$0xff]
    %v113 = vld [vmem:[#allocation2 + $0x20] sm:$0xff]
    %v114 = vld [vmem:[#allocation2 + $0x28] sm:$0xff]
    %v115 = vld [vmem:[#allocation2 + $0x30] sm:$0xff]
    %v116 = vld [vmem:[#allocation2 + $0x38] sm:$0xff]
    %v117 = vld [vmem:[#allocation2 + $0x40] sm:$0xff]
    %v118 = vld [vmem:[#allocation2 + $0x48] sm:$0xff]
    %v119 = vld [vmem:[#allocation2 + $0x50] sm:$0xff]
    %v120 = vld [vmem:[#allocation2 + $0x58] sm:$0x1]
    %v121 = vlaneseq
    %v122 = vshrl.u32 %v121, 7
    %v123 = vsub.s32 0, %v122
    %v124 = vrot.slane %v120, %v123
    %vm125 = vcmask 523264
    %v127 = vsel %vm125, %v111, 0
    %129 = vmatprep.subr.mxu0 0.0
    %130 = vmatpush1.msra.mxu0 %v112
    %131 = vmatprep.subr.mxu0 0.0
    %132 = vmatpush1.msra.mxu0 %v113
    %133 = vmatprep.subr.mxu0 0.0
    %134 = vmatpush1.msra.mxu0 %v114
    %135 = vmatprep.subr.mxu0 0.0
    %136 = vmatpush1.msra.mxu0 %v115
    %137 = vmatprep.subr.mxu0 0.0
    %138 = vmatpush1.msra.mxu0 %v116
    %139 = vmatprep.subr.mxu0 0.0
    %140 = vmatpush1.msra.mxu0 %v117
    %141 = vmatprep.subr.mxu0 0.0
    %142 = vmatpush1.msra.mxu0 %v118
    %143 = vmatprep.subr.mxu0 0.0
    %144 = vmatpush1.msra.mxu0 %v119
    %145 = vmatprep.subr.mxu0 0.0
    %146 = vmatpush1.msra.mxu0 0.0
    %147 = vmatprep.subr.mxu0 0.0
    %148 = vmatpush1.msra.mxu0 0.0
    %149 = vmatprep.subr.mxu0 0.0
    %150 = vmatpush1.msra.mxu0 0.0
    %151 = vmatprep.subr.mxu0 0.0
    %152 = vmatpush1.msra.mxu0 0.0
    %153 = vmatprep.subr.mxu0 0.0
    %154 = vmatpush1.msra.mxu0 0.0
    %155 = vmatprep.subr.mxu0 0.0
    %156 = vmatpush1.msra.mxu0 0.0
    %157 = vmatprep.subr.mxu0 0.0
    %158 = vmatpush1.msra.mxu0 0.0
    %159 = vmatprep.subr.mxu0 0.0
    %160 = vmatpush1.msra.mxu0 0.0
    %161 = vmatprep.subr.mxu0 0.0
    %162 = vmatpush1.msra.mxu0 0.0
    %163 = vmatprep.subr.mxu0 0.0
    %164 = vmatpush1.msra.mxu0 0.0
    %165 = vmatprep.subr.mxu0 0.0
    %166 = vmatpush1.msra.mxu0 0.0
    %167 = vmatprep.subr.mxu0 0.0
    %168 = vmatpush1.msra.mxu0 0.0
    %169 = vmatprep.subr.mxu0 0.0
    %170 = vmatpush1.msra.mxu0 0.0
    %171 = vmatprep.subr.mxu0 0.0
    %172 = vmatpush1.msra.mxu0 0.0
    %173 = vmatprep.subr.mxu0 0.0
    %174 = vmatpush1.msra.mxu0 0.0
    %175 = vmatprep.subr.mxu0 0.0
    %176 = vmatpush1.msra.mxu0 0.0
    %177 = vmatprep.subr.mxu0 0.0
    %178 = vmatpush1.msra.mxu0 0.0
    %179 = vmatprep.subr.mxu0 0.0
    %180 = vmatpush1.msra.mxu0 0.0
    %181 = vmatprep.subr.mxu0 0.0
    %182 = vmatpush1.msra.mxu0 0.0
    %183 = vmatprep.subr.mxu0 0.0
    %184 = vmatpush1.msra.mxu0 0.0
    %185 = vmatprep.subr.mxu0 0.0
    %186 = vmatpush1.msra.mxu0 0.0
    %187 = vmatprep.subr.mxu0 0.0
    %188 = vmatpush1.msra.mxu0 0.0
    %189 = vmatprep.subr.mxu0 0.0
    %190 = vmatpush1.msra.mxu0 0.0
    %191 = vmatprep.subr.mxu0 0.0
    %192 = vmatpush1.msra.mxu0 0.0
    %193 = vmatprep.mubr.f32.mxu0 0.0
    %194 = vmatmul.mubr.f32.gmra.mrb[0].mxu0 %v127
    %v195 = vpop.f32.mrb[0].mxu0
    %v196 = vadd.f32 %v124, %v195
    %v197 = vpop.f32.mrb[0].mxu0
    %198 = vdwg.mxu0
    %v199 = vmax.f32 %v196, 0.0
    %v200 = vld [vmem:[#allocation2 + $0x60] sm:$0xff]
    %v201 = vld [vmem:[#allocation2 + $0x68] sm:$0xff]
    %v202 = vld [vmem:[#allocation2 + $0x70] sm:$0xff]
    %v203 = vld [vmem:[#allocation2 + $0x78] sm:$0xff]
    %v204 = vld [vmem:[#allocation2 + $0x80] sm:$0x1]
    %v205 = vlaneseq
    %v206 = vshrl.u32 %v205, 7
    %v207 = vsub.s32 0, %v206
    %v208 = vrot.slane %v204, %v207
    %vm209 = vcmask 261120
    %v211 = vsel %vm209, %v199, 0
    %213 = vmatprep.subr.mxu0 0.0
    %214 = vmatpush1.msra.mxu0 %v200
    %215 = vmatprep.subr.mxu0 0.0
    %216 = vmatpush1.msra.mxu0 %v201
    %217 = vmatprep.subr.mxu0 0.0
    %218 = vmatpush1.msra.mxu0 %v202
    %219 = vmatprep.subr.mxu0 0.0
    %220 = vmatpush1.msra.mxu0 %v203
    %221 = vmatprep.subr.mxu0 0.0
    %222 = vmatpush1.msra.mxu0 0.0
    %223 = vmatprep.subr.mxu0 0.0
    %224 = vmatpush1.msra.mxu0 0.0
    %225 = vmatprep.subr.mxu0 0.0
    %226 = vmatpush1.msra.mxu0 0.0
    %227 = vmatprep.subr.mxu0 0.0
    %228 = vmatpush1.msra.mxu0 0.0
    %229 = vmatprep.subr.mxu0 0.0
    %230 = vmatpush1.msra.mxu0 0.0
    %231 = vmatprep.subr.mxu0 0.0
    %232 = vmatpush1.msra.mxu0 0.0
    %233 = vmatprep.subr.mxu0 0.0
    %234 = vmatpush1.msra.mxu0 0.0
    %235 = vmatprep.subr.mxu0 0.0
    %236 = vmatpush1.msra.mxu0 0.0
    %237 = vmatprep.subr.mxu0 0.0
    %238 = vmatpush1.msra.mxu0 0.0
    %239 = vmatprep.subr.mxu0 0.0
    %240 = vmatpush1.msra.mxu0 0.0
    %241 = vmatprep.subr.mxu0 0.0
    %242 = vmatpush1.msra.mxu0 0.0
    %243 = vmatprep.subr.mxu0 0.0
    %244 = vmatpush1.msra.mxu0 0.0
    %245 = vmatprep.subr.mxu0 0.0
    %246 = vmatpush1.msra.mxu0 0.0
    %247 = vmatprep.subr.mxu0 0.0
    %248 = vmatpush1.msra.mxu0 0.0
    %249 = vmatprep.subr.mxu0 0.0
    %250 = vmatpush1.msra.mxu0 0.0
    %251 = vmatprep.subr.mxu0 0.0
    %252 = vmatpush1.msra.mxu0 0.0
    %253 = vmatprep.subr.mxu0 0.0
    %254 = vmatpush1.msra.mxu0 0.0
    %255 = vmatprep.subr.mxu0 0.0
    %256 = vmatpush1.msra.mxu0 0.0
    %257 = vmatprep.subr.mxu0 0.0
    %258 = vmatpush1.msra.mxu0 0.0
    %259 = vmatprep.subr.mxu0 0.0
    %260 = vmatpush1.msra.mxu0 0.0
    %261 = vmatprep.subr.mxu0 0.0
    %262 = vmatpush1.msra.mxu0 0.0
    %263 = vmatprep.subr.mxu0 0.0
    %264 = vmatpush1.msra.mxu0 0.0
    %265 = vmatprep.subr.mxu0 0.0
    %266 = vmatpush1.msra.mxu0 0.0
    %267 = vmatprep.subr.mxu0 0.0
    %268 = vmatpush1.msra.mxu0 0.0
    %269 = vmatprep.subr.mxu0 0.0
    %270 = vmatpush1.msra.mxu0 0.0
    %271 = vmatprep.subr.mxu0 0.0
    %272 = vmatpush1.msra.mxu0 0.0
    %273 = vmatprep.subr.mxu0 0.0
    %274 = vmatpush1.msra.mxu0 0.0
    %275 = vmatprep.subr.mxu0 0.0
    %276 = vmatpush1.msra.mxu0 0.0
    %277 = vmatprep.mubr.f32.mxu0 0.0
    %278 = vmatmul.mubr.f32.gmra.mrb[0].mxu0 %v211
    %v279 = vpop.f32.mrb[0].mxu0
    %v280 = vadd.f32 %v208, %v279
    %v281 = vpop.f32.mrb[0].mxu0
    %282 = vdwg.mxu0
    %v283 = vld [vmem:[%s1] sm:$0xff]
    %v284 = vmul.f32 %v280, 0.5
    %v285 = vmul.f32 %v284, 1.442695
    %v286 = vpow.pop %v285
    %288 = vrot.lane.b32.xlu0 %v286, 126
    %v289 = vpop.permute.xlu0 %288
    %v291 = vmul.f32 %v283, %v289
    %v292 = vadd.f32 %v280, %v291
    %v293 = vld [vmem:[#allocation2 + $0x88] sm:$0x3]
    %v294 = vld [vmem:[#allocation2 + $0x90] sm:$0x1]
    %296 = vset.pattern.permute.xlu0 0
    %297 = vperm.xlu0 %296, %v292
    %v298 = vpop.permute.xlu0 %297
    %v300 = vlaneseq
    %v301 = vshrl.u32 %v300, 7
    %v302 = vsub.s32 0, %v301
    %v303 = vrot.slane %v293, %v302
    %v304 = vmul.f32 %v298, %v303
    %v305 = vlaneseq
    %v306 = vshrl.u32 %v305, 7
    %v307 = vsub.s32 0, %v306
    %v308 = vrot.slane %v294, %v307
    %v309 = vadd.f32 %v308, %v304
    %310 = vset.pattern.permute.xlu0 1
    %311 = vperm.xlu0 %310, %v292
    %v312 = vpop.permute.xlu0 %311
    %v314 = vlaneseq
    %v315 = vshrl.u32 %v314, 7
    %v316 = vsub.s32 1, %v315
    %v317 = vrot.slane %v293, %v316
    %v318 = vmul.f32 %v312, %v317
    %v319 = vadd.f32 %v309, %v318
    %v320 = vmax.f32 %v319, 0.0
    %v321 = vld [vmem:[#allocation2 + $0x98] sm:$0xff]
    %v322 = vld [vmem:[#allocation2 + $0xa0] sm:$0xff]
    %v323 = vld [vmem:[#allocation2 + $0xa8] sm:$0xff]
    %v324 = vld [vmem:[#allocation2 + $0xb0] sm:$0xff]
    %v325 = vld [vmem:[#allocation2 + $0xb8] sm:$0x1]
    %v326 = vlaneseq
    %v327 = vshrl.u32 %v326, 7
    %v328 = vsub.s32 0, %v327
    %v329 = vrot.slane %v325, %v328
    %v331 = vsel %vm209, %v320, 0
    %333 = vmatprep.subr.mxu0 0.0
    %334 = vmatpush1.msra.mxu0 %v321
    %335 = vmatprep.subr.mxu0 0.0
    %336 = vmatpush1.msra.mxu0 %v322
    %337 = vmatprep.subr.mxu0 0.0
    %338 = vmatpush1.msra.mxu0 %v323
    %339 = vmatprep.subr.mxu0 0.0
    %340 = vmatpush1.msra.mxu0 %v324
    %341 = vmatprep.subr.mxu0 0.0
    %342 = vmatpush1.msra.mxu0 0.0
    %343 = vmatprep.subr.mxu0 0.0
    %344 = vmatpush1.msra.mxu0 0.0
    %345 = vmatprep.subr.mxu0 0.0
    %346 = vmatpush1.msra.mxu0 0.0
    %347 = vmatprep.subr.mxu0 0.0
    %348 = vmatpush1.msra.mxu0 0.0
    %349 = vmatprep.subr.mxu0 0.0
    %350 = vmatpush1.msra.mxu0 0.0
    %351 = vmatprep.subr.mxu0 0.0
    %352 = vmatpush1.msra.mxu0 0.0
    %353 = vmatprep.subr.mxu0 0.0
    %354 = vmatpush1.msra.mxu0 0.0
    %355 = vmatprep.subr.mxu0 0.0
    %356 = vmatpush1.msra.mxu0 0.0
    %357 = vmatprep.subr.mxu0 0.0
    %358 = vmatpush1.msra.mxu0 0.0
    %359 = vmatprep.subr.mxu0 0.0
    %360 = vmatpush1.msra.mxu0 0.0
    %361 = vmatprep.subr.mxu0 0.0
    %362 = vmatpush1.msra.mxu0 0.0
    %363 = vmatprep.subr.mxu0 0.0
    %364 = vmatpush1.msra.mxu0 0.0
    %365 = vmatprep.subr.mxu0 0.0
    %366 = vmatpush1.msra.mxu0 0.0
    %367 = vmatprep.subr.mxu0 0.0
    %368 = vmatpush1.msra.mxu0 0.0
    %369 = vmatprep.subr.mxu0 0.0
    %370 = vmatpush1.msra.mxu0 0.0
    %371 = vmatprep.subr.mxu0 0.0
    %372 = vmatpush1.msra.mxu0 0.0
    %373 = vmatprep.subr.mxu0 0.0
    %374 = vmatpush1.msra.mxu0 0.0
    %375 = vmatprep.subr.mxu0 0.0
    %376 = vmatpush1.msra.mxu0 0.0
    %377 = vmatprep.subr.mxu0 0.0
    %378 = vmatpush1.msra.mxu0 0.0
    %379 = vmatprep.subr.mxu0 0.0
    %380 = vmatpush1.msra.mxu0 0.0
    %381 = vmatprep.subr.mxu0 0.0
    %382 = vmatpush1.msra.mxu0 0.0
    %383 = vmatprep.subr.mxu0 0.0
    %384 = vmatpush1.msra.mxu0 0.0
    %385 = vmatprep.subr.mxu0 0.0
    %386 = vmatpush1.msra.mxu0 0.0
    %387 = vmatprep.subr.mxu0 0.0
    %388 = vmatpush1.msra.mxu0 0.0
    %389 = vmatprep.subr.mxu0 0.0
    %390 = vmatpush1.msra.mxu0 0.0
    %391 = vmatprep.subr.mxu0 0.0
    %392 = vmatpush1.msra.mxu0 0.0
    %393 = vmatprep.subr.mxu0 0.0
    %394 = vmatpush1.msra.mxu0 0.0
    %395 = vmatprep.subr.mxu0 0.0
    %396 = vmatpush1.msra.mxu0 0.0
    %397 = vmatprep.mubr.f32.mxu0 0.0
    %398 = vmatmul.mubr.f32.gmra.mrb[0].mxu0 %v331
    %v399 = vpop.f32.mrb[0].mxu0
    %v400 = vadd.f32 %v329, %v399
    %v401 = vpop.f32.mrb[0].mxu0
    %402 = vdwg.mxu0
    %v403 = vmax.f32 %v400, 0.0
    %v404 = vld [vmem:[#allocation2 + $0xc0] sm:$0xff]
    %v405 = vld [vmem:[#allocation2 + $0xc8] sm:$0xff]
    %v406 = vld [vmem:[#allocation2 + $0xd0] sm:$0xff]
    %v407 = vld [vmem:[#allocation2 + $0xd8] sm:$0xff]
    %v408 = vld [vmem:[#allocation2 + $0xe0] sm:$0xff]
    %v409 = vld [vmem:[#allocation2 + $0xe8] sm:$0xff]
    %v410 = vld [vmem:[#allocation2 + $0xf0] sm:$0xff]
    %v411 = vld [vmem:[#allocation2 + $0xf8] sm:$0xff]
    %v412 = vld [vmem:[#allocation2 + $0x100] sm:$0x1]
    %v413 = vlaneseq
    %v414 = vshrl.u32 %v413, 7
    %v415 = vsub.s32 0, %v414
    %v416 = vrot.slane %v412, %v415
    %v418 = vsel %vm125, %v403, 0
    %420 = vmatprep.subr.mxu0 0.0
    %421 = vmatpush1.msra.mxu0 %v404
    %422 = vmatprep.subr.mxu0 0.0
    %423 = vmatpush1.msra.mxu0 %v405
    %424 = vmatprep.subr.mxu0 0.0
    %425 = vmatpush1.msra.mxu0 %v406
    %426 = vmatprep.subr.mxu0 0.0
    %427 = vmatpush1.msra.mxu0 %v407
    %428 = vmatprep.subr.mxu0 0.0
    %429 = vmatpush1.msra.mxu0 %v408
    %430 = vmatprep.subr.mxu0 0.0
    %431 = vmatpush1.msra.mxu0 %v409
    %432 = vmatprep.subr.mxu0 0.0
    %433 = vmatpush1.msra.mxu0 %v410
    %434 = vmatprep.subr.mxu0 0.0
    %435 = vmatpush1.msra.mxu0 %v411
    %436 = vmatprep.subr.mxu0 0.0
    %437 = vmatpush1.msra.mxu0 0.0
    %438 = vmatprep.subr.mxu0 0.0
    %439 = vmatpush1.msra.mxu0 0.0
    %440 = vmatprep.subr.mxu0 0.0
    %441 = vmatpush1.msra.mxu0 0.0
    %442 = vmatprep.subr.mxu0 0.0
    %443 = vmatpush1.msra.mxu0 0.0
    %444 = vmatprep.subr.mxu0 0.0
    %445 = vmatpush1.msra.mxu0 0.0
    %446 = vmatprep.subr.mxu0 0.0
    %447 = vmatpush1.msra.mxu0 0.0
    %448 = vmatprep.subr.mxu0 0.0
    %449 = vmatpush1.msra.mxu0 0.0
    %450 = vmatprep.subr.mxu0 0.0
    %451 = vmatpush1.msra.mxu0 0.0
    %452 = vmatprep.subr.mxu0 0.0
    %453 = vmatpush1.msra.mxu0 0.0
    %454 = vmatprep.subr.mxu0 0.0
    %455 = vmatpush1.msra.mxu0 0.0
    %456 = vmatprep.subr.mxu0 0.0
    %457 = vmatpush1.msra.mxu0 0.0
    %458 = vmatprep.subr.mxu0 0.0
    %459 = vmatpush1.msra.mxu0 0.0
    %460 = vmatprep.subr.mxu0 0.0
    %461 = vmatpush1.msra.mxu0 0.0
    %462 = vmatprep.subr.mxu0 0.0
    %463 = vmatpush1.msra.mxu0 0.0
    %464 = vmatprep.subr.mxu0 0.0
    %465 = vmatpush1.msra.mxu0 0.0
    %466 = vmatprep.subr.mxu0 0.0
    %467 = vmatpush1.msra.mxu0 0.0
    %468 = vmatprep.subr.mxu0 0.0
    %469 = vmatpush1.msra.mxu0 0.0
    %470 = vmatprep.subr.mxu0 0.0
    %471 = vmatpush1.msra.mxu0 0.0
    %472 = vmatprep.subr.mxu0 0.0
    %473 = vmatpush1.msra.mxu0 0.0
    %474 = vmatprep.subr.mxu0 0.0
    %475 = vmatpush1.msra.mxu0 0.0
    %476 = vmatprep.subr.mxu0 0.0
    %477 = vmatpush1.msra.mxu0 0.0
    %478 = vmatprep.subr.mxu0 0.0
    %479 = vmatpush1.msra.mxu0 0.0
    %480 = vmatprep.subr.mxu0 0.0
    %481 = vmatpush1.msra.mxu0 0.0
    %482 = vmatprep.subr.mxu0 0.0
    %483 = vmatpush1.msra.mxu0 0.0
    %484 = vmatprep.mubr.f32.mxu0 0.0
    %485 = vmatmul.mubr.f32.gmra.mrb[0].mxu0 %v418
    %v486 = vpop.f32.mrb[0].mxu0
    %v487 = vadd.f32 %v416, %v486
    %v488 = vpop.f32.mrb[0].mxu0
    %489 = vdwg.mxu0
    %490 = vst.msk [vmem:[#allocation5] sm:$0xff] %vm37, %v487
    %492 = vrot.lane.b32.xlu0 %v280, 16
    %v493 = vpop.permute.xlu0 %492
    %vm495 = vcmask 146560
    %496 = vst.msk [vmem:[#allocation5] sm:$0xff] %vm495, %v493
    %vm497 = vcmask 162960
    %498 = vst.msk [vmem:[#allocation5] sm:$0xff] %vm497, %v493
    // Predicated region
    $region18: #{tpu_custom_call.1} parent=1 // pred_check
      _
    $region19: #{tpu_custom_call.1} parent=1 // pred_check_branch
      %500 = sbr.rel (0) target = $region21
    $region20: #{tpu_custom_call.1} parent=1 // pred_region
      %s502 = ssub.s32 128, 128
      %503 = vsyncadd [#allocation4], %s502
      %s505 = sshll.u32 [#allocation5], 4
      %s506 = int_to_ptr.vmem [resolvable:$true] %s505
      %508 = dma.vmem_to_hbm [thread:$0]  %s506, 128, %s3, [#allocation4]
    $region21: #{tpu_custom_call.1} parent=1 // pred_fallthru
      _
    // Predicated region
    $region22: #{tpu_custom_call.1} parent=1 // pred_check
      _
    $region23: #{tpu_custom_call.1} parent=1 // pred_check_branch
      %510 = sbr.rel (0) target = $region25
    $region24: #{tpu_custom_call.1} parent=1 // pred_region
      %511 = dma.done [#allocation4], 128
    $region25: #{tpu_custom_call.1} parent=1 // pred_fallthru
      _
    %512 = vsyncpa [#allocation3], 1
    %513 = vsyncpa [#allocation4], 1

</llo_original>
